<compile_context>
chip_gen: v7x
topology: tpu7x:2x2x1
jax: 0.10.0
libtpu: 0.0.40
codegen_flags: <defaults>
</compile_context>

<pallas_src>
import functools

import jax
import jax.numpy as jnp
from jax.experimental import pallas as pl
from jax.experimental.pallas import tpu as pltpu


def _round_up(x, m):
    return (x + m - 1) // m * m


def _aucm_kernel(y_pred_ref, y_true_ref, a_ref, b_ref, alpha_ref, loss_ref,
                 npos_ref, s1p_ref, s2p_ref, s1_ref, s2_ref, *, n_rows):
    """Grid = (class_tiles, batch_tiles); batch axis (1) is the reduction."""
    i = pl.program_id(1)

    @pl.when(i == 0)
    def _init():
        npos_ref[...] = jnp.zeros_like(npos_ref)
        s1p_ref[...] = jnp.zeros_like(s1p_ref)
        s2p_ref[...] = jnp.zeros_like(s2p_ref)
        s1_ref[...] = jnp.zeros_like(s1_ref)
        s2_ref[...] = jnp.zeros_like(s2_ref)

    # Cast in-kernel (inputs may be bf16 to halve HBM traffic); accumulate f32.
    yp = y_pred_ref[...].astype(jnp.float32)          # (TILE_N, TILE_C)
    yt = y_true_ref[...].astype(jnp.float32)          # (TILE_N, TILE_C)

    # Binary labels assumed (as in the reference loss): neg mask == 1 - pos,
    # so the neg-side sums are derived from totals at finalize time.
    pos = (yt == 1.0).astype(jnp.float32)
    yp_pos = yp * pos
    yp2 = yp * yp

    npos_ref[...] += jnp.sum(pos, axis=0, keepdims=True)
    s1p_ref[...] += jnp.sum(yp_pos, axis=0, keepdims=True)
    s2p_ref[...] += jnp.sum(yp2 * pos, axis=0, keepdims=True)
    s1_ref[...] += jnp.sum(yp, axis=0, keepdims=True)
    s2_ref[...] += jnp.sum(yp2, axis=0, keepdims=True)

    @pl.when(i == pl.num_programs(1) - 1)
    def _finalize():
        inv_n = jnp.float32(1.0 / n_rows)
        a = a_ref[...]
        b = b_ref[...]
        al = alpha_ref[...]

        n_pos = npos_ref[...]
        s1p = s1p_ref[...]
        s2p = s2p_ref[...]
        s1n = s1_ref[...] - s1p
        s2n = s2_ref[...] - s2p
        n_neg = jnp.float32(n_rows) - n_pos

        p = n_pos * inv_n
        q = 1.0 - p

        # (yp-a)^2*pos expanded:  s2p - 2a*s1p + a^2*n_pos   (same for neg/b)
        t1 = q * inv_n * (s2p - 2.0 * a * s1p + a * a * n_pos)
        t2 = p * inv_n * (s2n - 2.0 * b * s1n + b * b * n_neg)
        inner = p * q + inv_n * (p * s1n - q * s1p)
        t3 = 2.0 * al * inner
        t4 = p * q * al * al

        loss_ref[...] = t1 + t2 + t3 - t4               # per-class loss (1, TILE_C)


def aucm_multilabel_loss(y_pred, y_true, a, b, alpha, *, tile_n=None, tile_c=None):
    """y_pred, y_true: [N, C] (f32 or bf16); a, b, alpha: [C] f32 -> scalar."""
    n, c = y_pred.shape

    # Tile sizing: multiples of (16, 128) so the same tiles work for bf16
    # inputs; defaults keep double-buffered input DMA well under the scoped
    # VMEM defaults on v5e/v6e/v7x.
    if tile_n is None:
        tile_n = min(1024, _round_up(n, 16))
    if tile_c is None:
        tile_c = min(512, _round_up(c, 128))
    assert tile_n % 16 == 0 and tile_c % 128 == 0

    n_pad = _round_up(n, tile_n)
    c_pad = _round_up(c, tile_c)

    # Zero padding is exact: padded rows/cols have y_pred=0, y_true=0, so they
    # contribute nothing to any accumulated sum; p and all means divide by the
    # true N (baked statically into the kernel).
    yp = y_pred
    yt = y_true
    if (n_pad, c_pad) != (n, c):
        yp = jnp.pad(yp, ((0, n_pad - n), (0, c_pad - c)))
        yt = jnp.pad(yt, ((0, n_pad - n), (0, c_pad - c)))
    a2 = jnp.pad(a.astype(jnp.float32), (0, c_pad - c)).reshape(1, c_pad)
    b2 = jnp.pad(b.astype(jnp.float32), (0, c_pad - c)).reshape(1, c_pad)
    al2 = jnp.pad(alpha.astype(jnp.float32), (0, c_pad - c)).reshape(1, c_pad)

    grid = (c_pad // tile_c, n_pad // tile_n)   # (class tiles, batch tiles)
    kernel = functools.partial(_aucm_kernel, n_rows=float(n))

    per_class = pl.pallas_call(
        kernel,
        out_shape=jax.ShapeDtypeStruct((1, c_pad), jnp.float32),
        grid_spec=pltpu.PrefetchScalarGridSpec(
            num_scalar_prefetch=0,
            grid=grid,
            in_specs=[
                pl.BlockSpec((tile_n, tile_c), lambda j, i: (i, j)),   # y_pred
                pl.BlockSpec((tile_n, tile_c), lambda j, i: (i, j)),   # y_true
                pl.BlockSpec((1, tile_c), lambda j, i: (0, j)),        # a
                pl.BlockSpec((1, tile_c), lambda j, i: (0, j)),        # b
                pl.BlockSpec((1, tile_c), lambda j, i: (0, j)),        # alpha
            ],
            out_specs=pl.BlockSpec((1, tile_c), lambda j, i: (0, j)),  # resident over i
            scratch_shapes=[pltpu.VMEM((1, tile_c), jnp.float32) for _ in range(5)],
        ),
        compiler_params=pltpu.CompilerParams(
            dimension_semantics=("parallel", "arbitrary")),
    )(yp, yt, a2, b2, al2)

    # O(C) epilogue in XLA: drop padded class columns, sum over classes.
    return jnp.sum(per_class[0, :c])


def aucm_multilabel_loss_ref(y_pred, y_true, a, b, alpha):
    """Pure-JAX reference mirroring the PyTorch forward (auto=True)."""
    yp = y_pred.astype(jnp.float32)
    yt = y_true.astype(jnp.float32)
    pos = (yt == 1.0).astype(jnp.float32)
    neg = (yt == 0.0).astype(jnp.float32)
    p = jnp.mean(pos, axis=0)                               # (C,)
    t1 = (1 - p) * jnp.mean((yp - a[None, :]) ** 2 * pos, axis=0)
    t2 = p * jnp.mean((yp - b[None, :]) ** 2 * neg, axis=0)
    inner = p * (1 - p) + jnp.mean(
        p[None, :] * yp * neg - (1 - p)[None, :] * yp * pos, axis=0
    )
    t3 = 2 * alpha * inner
    t4 = p * (1 - p) * alpha ** 2
    return jnp.sum(t1 + t2 + t3 - t4)


if __name__ == "__main__":
    num_classes = 10     # module default
    batch = 48

    key = jax.random.PRNGKey(0)
    k1, k2 = jax.random.split(key)

    # y_pred: sigmoid-like scores in (0, 1); y_true: binary labels {0., 1.}
    y_pred = jax.nn.sigmoid(jax.random.normal(k1, (batch, num_classes), jnp.float32))
    y_true = (jax.random.uniform(k2, (batch, num_classes)) > 0.5).astype(jnp.float32)

    # Module __init__: a, b, alpha are zeros(num_classes) float32.
    a = jnp.zeros((num_classes,), jnp.float32)
    b = jnp.zeros((num_classes,), jnp.float32)
    alpha = jnp.zeros((num_classes,), jnp.float32)

    loss_ref = aucm_multilabel_loss_ref(y_pred, y_true, a, b, alpha)

    # Small tiles -> grid (1, 3): exercises the multi-step batch reduction.
    loss = aucm_multilabel_loss(y_pred, y_true, a, b, alpha, tile_n=16, tile_c=128)
    jax.block_until_ready(loss)
    assert jnp.allclose(loss, loss_ref, atol=1e-4, rtol=1e-4), (loss, loss_ref)

    # Default (auto-sized) tiles.
    loss2 = aucm_multilabel_loss(y_pred, y_true, a, b, alpha)
    jax.block_until_ready(loss2)
    assert jnp.allclose(loss2, loss_ref, atol=1e-4, rtol=1e-4), (loss2, loss_ref)

    # Non-zero a/b/alpha (as after some training steps) to check the full
    # finalize algebra, still against the exact reference formula.
    k3, k4, k5 = jax.random.split(jax.random.PRNGKey(1), 3)
    a_r = 0.1 * jax.random.normal(k3, (num_classes,), jnp.float32)
    b_r = 0.1 * jax.random.normal(k4, (num_classes,), jnp.float32)
    al_r = 0.1 * jax.random.normal(k5, (num_classes,), jnp.float32)
    loss3 = aucm_multilabel_loss(y_pred, y_true, a_r, b_r, al_r, tile_n=16, tile_c=128)
    jax.block_until_ready(loss3)
    loss3_ref = aucm_multilabel_loss_ref(y_pred, y_true, a_r, b_r, al_r)
    assert jnp.allclose(loss3, loss3_ref, atol=1e-4, rtol=1e-4), (loss3, loss3_ref)

    print("KERNEL_OK")
</pallas_src>

<mosaic_0001>
module attributes {stable_mosaic.version = 11 : i64} {
  func.func @_aucm_kernel(%arg0: i32, %arg1: i32, %arg2: memref<16x128xf32, #tpu.memory_space<vmem>>, %arg3: memref<16x128xf32, #tpu.memory_space<vmem>>, %arg4: memref<1x128xf32, #tpu.memory_space<vmem>>, %arg5: memref<1x128xf32, #tpu.memory_space<vmem>>, %arg6: memref<1x128xf32, #tpu.memory_space<vmem>>, %arg7: memref<1x128xf32, #tpu.memory_space<vmem>>, %arg8: memref<1x128xf32, #tpu.memory_space<vmem>>, %arg9: memref<1x128xf32, #tpu.memory_space<vmem>>, %arg10: memref<1x128xf32, #tpu.memory_space<vmem>>, %arg11: memref<1x128xf32, #tpu.memory_space<vmem>>, %arg12: memref<1x128xf32, #tpu.memory_space<vmem>>) attributes {dimension_semantics = [#tpu.dimension_semantics<parallel>, #tpu.dimension_semantics<arbitrary>], iteration_bounds = array<i64: 1, 3>, scalar_prefetch = 0 : i64, scratch_operands = 5 : i64, tpu.core_type = #tpu.core_type<tc>, window_params = [{transform_indices = @transform_0, window_bounds = array<i64: 16, 128>}, {transform_indices = @transform_1, window_bounds = array<i64: 16, 128>}, {transform_indices = @transform_2, window_bounds = array<i64: 1, 128>}, {transform_indices = @transform_3, window_bounds = array<i64: 1, 128>}, {transform_indices = @transform_4, window_bounds = array<i64: 1, 128>}, {transform_indices = @transform_5, window_bounds = array<i64: 1, 128>}]} {
    %c0_i32 = arith.constant 0 : i32
    %0 = arith.cmpi eq, %arg1, %c0_i32 : i32
    %1 = arith.extui %0 : i1 to i32
    %c0_i32_0 = arith.constant 0 : i32
    %2 = arith.cmpi ne, %1, %c0_i32_0 : i32
    scf.if %2 {
      %cst_30 = arith.constant 0.000000e+00 : f32
      %40 = vector.broadcast %cst_30 : f32 to vector<1x128xf32>
      %c0_31 = arith.constant 0 : index
      %c0_32 = arith.constant 0 : index
      %41 = vector.load %arg8[%c0_31, %c0_32] : memref<1x128xf32, #tpu.memory_space<vmem>>, vector<1x128xf32>
      tpu.vector_store %arg8[%c0_31, %c0_32], %40 {strides = array<i32>} : memref<1x128xf32, #tpu.memory_space<vmem>>, vector<1x128xf32>,
      %cst_33 = arith.constant 0.000000e+00 : f32
      %42 = vector.broadcast %cst_33 : f32 to vector<1x128xf32>
      %c0_34 = arith.constant 0 : index
      %c0_35 = arith.constant 0 : index
      %43 = vector.load %arg9[%c0_34, %c0_35] : memref<1x128xf32, #tpu.memory_space<vmem>>, vector<1x128xf32>
      tpu.vector_store %arg9[%c0_34, %c0_35], %42 {strides = array<i32>} : memref<1x128xf32, #tpu.memory_space<vmem>>, vector<1x128xf32>,
      %cst_36 = arith.constant 0.000000e+00 : f32
      %44 = vector.broadcast %cst_36 : f32 to vector<1x128xf32>
      %c0_37 = arith.constant 0 : index
      %c0_38 = arith.constant 0 : index
      %45 = vector.load %arg10[%c0_37, %c0_38] : memref<1x128xf32, #tpu.memory_space<vmem>>, vector<1x128xf32>
      tpu.vector_store %arg10[%c0_37, %c0_38], %44 {strides = array<i32>} : memref<1x128xf32, #tpu.memory_space<vmem>>, vector<1x128xf32>,
      %cst_39 = arith.constant 0.000000e+00 : f32
      %46 = vector.broadcast %cst_39 : f32 to vector<1x128xf32>
      %c0_40 = arith.constant 0 : index
      %c0_41 = arith.constant 0 : index
      %47 = vector.load %arg11[%c0_40, %c0_41] : memref<1x128xf32, #tpu.memory_space<vmem>>, vector<1x128xf32>
      tpu.vector_store %arg11[%c0_40, %c0_41], %46 {strides = array<i32>} : memref<1x128xf32, #tpu.memory_space<vmem>>, vector<1x128xf32>,
      %cst_42 = arith.constant 0.000000e+00 : f32
      %48 = vector.broadcast %cst_42 : f32 to vector<1x128xf32>
      %c0_43 = arith.constant 0 : index
      %c0_44 = arith.constant 0 : index
      %49 = vector.load %arg12[%c0_43, %c0_44] : memref<1x128xf32, #tpu.memory_space<vmem>>, vector<1x128xf32>
      tpu.vector_store %arg12[%c0_43, %c0_44], %48 {strides = array<i32>} : memref<1x128xf32, #tpu.memory_space<vmem>>, vector<1x128xf32>,
    } else {
    }
    %c0 = arith.constant 0 : index
    %c0_1 = arith.constant 0 : index
    %3 = vector.load %arg2[%c0, %c0_1] : memref<16x128xf32, #tpu.memory_space<vmem>>, vector<16x128xf32>
    %c0_2 = arith.constant 0 : index
    %c0_3 = arith.constant 0 : index
    %4 = vector.load %arg3[%c0_2, %c0_3] : memref<16x128xf32, #tpu.memory_space<vmem>>, vector<16x128xf32>
    %cst = arith.constant 1.000000e+00 : f32
    %5 = vector.broadcast %cst : f32 to vector<16x128xf32>
    %6 = arith.cmpf oeq, %4, %5 : vector<16x128xf32>
    %7 = arith.extui %6 : vector<16x128xi1> to vector<16x128xi32>
    %8 = arith.sitofp %7 : vector<16x128xi32> to vector<16x128xf32>
    %9 = arith.mulf %3, %8 : vector<16x128xf32>
    %10 = arith.mulf %3, %3 : vector<16x128xf32>
    %c0_4 = arith.constant 0 : index
    %c0_5 = arith.constant 0 : index
    %11 = vector.load %arg8[%c0_4, %c0_5] : memref<1x128xf32, #tpu.memory_space<vmem>>, vector<1x128xf32>
    %cst_6 = arith.constant dense<0.000000e+00> : vector<128xf32>
    %12 = vector.multi_reduction <add>, %8, %cst_6 [0] : vector<16x128xf32> to vector<128xf32>
    %13 = vector.shape_cast %12 : vector<128xf32> to vector<1x128xf32>
    %14 = arith.addf %11, %13 : vector<1x128xf32>
    %c0_7 = arith.constant 0 : index
    %c0_8 = arith.constant 0 : index
    %15 = vector.load %arg8[%c0_7, %c0_8] : memref<1x128xf32, #tpu.memory_space<vmem>>, vector<1x128xf32>
    tpu.vector_store %arg8[%c0_7, %c0_8], %14 {strides = array<i32>} : memref<1x128xf32, #tpu.memory_space<vmem>>, vector<1x128xf32>,
    %c0_9 = arith.constant 0 : index
    %c0_10 = arith.constant 0 : index
    %16 = vector.load %arg9[%c0_9, %c0_10] : memref<1x128xf32, #tpu.memory_space<vmem>>, vector<1x128xf32>
    %cst_11 = arith.constant dense<0.000000e+00> : vector<128xf32>
    %17 = vector.multi_reduction <add>, %9, %cst_11 [0] : vector<16x128xf32> to vector<128xf32>
    %18 = vector.shape_cast %17 : vector<128xf32> to vector<1x128xf32>
    %19 = arith.addf %16, %18 : vector<1x128xf32>
    %c0_12 = arith.constant 0 : index
    %c0_13 = arith.constant 0 : index
    %20 = vector.load %arg9[%c0_12, %c0_13] : memref<1x128xf32, #tpu.memory_space<vmem>>, vector<1x128xf32>
    tpu.vector_store %arg9[%c0_12, %c0_13], %19 {strides = array<i32>} : memref<1x128xf32, #tpu.memory_space<vmem>>, vector<1x128xf32>,
    %c0_14 = arith.constant 0 : index
    %c0_15 = arith.constant 0 : index
    %21 = vector.load %arg10[%c0_14, %c0_15] : memref<1x128xf32, #tpu.memory_space<vmem>>, vector<1x128xf32>
    %22 = arith.mulf %10, %8 : vector<16x128xf32>
    %cst_16 = arith.constant dense<0.000000e+00> : vector<128xf32>
    %23 = vector.multi_reduction <add>, %22, %cst_16 [0] : vector<16x128xf32> to vector<128xf32>
    %24 = vector.shape_cast %23 : vector<128xf32> to vector<1x128xf32>
    %25 = arith.addf %21, %24 : vector<1x128xf32>
    %c0_17 = arith.constant 0 : index
    %c0_18 = arith.constant 0 : index
    %26 = vector.load %arg10[%c0_17, %c0_18] : memref<1x128xf32, #tpu.memory_space<vmem>>, vector<1x128xf32>
    tpu.vector_store %arg10[%c0_17, %c0_18], %25 {strides = array<i32>} : memref<1x128xf32, #tpu.memory_space<vmem>>, vector<1x128xf32>,
    %c0_19 = arith.constant 0 : index
    %c0_20 = arith.constant 0 : index
    %27 = vector.load %arg11[%c0_19, %c0_20] : memref<1x128xf32, #tpu.memory_space<vmem>>, vector<1x128xf32>
    %cst_21 = arith.constant dense<0.000000e+00> : vector<128xf32>
    %28 = vector.multi_reduction <add>, %3, %cst_21 [0] : vector<16x128xf32> to vector<128xf32>
    %29 = vector.shape_cast %28 : vector<128xf32> to vector<1x128xf32>
    %30 = arith.addf %27, %29 : vector<1x128xf32>
    %c0_22 = arith.constant 0 : index
    %c0_23 = arith.constant 0 : index
    %31 = vector.load %arg11[%c0_22, %c0_23] : memref<1x128xf32, #tpu.memory_space<vmem>>, vector<1x128xf32>
    tpu.vector_store %arg11[%c0_22, %c0_23], %30 {strides = array<i32>} : memref<1x128xf32, #tpu.memory_space<vmem>>, vector<1x128xf32>,
    %c0_24 = arith.constant 0 : index
    %c0_25 = arith.constant 0 : index
    %32 = vector.load %arg12[%c0_24, %c0_25] : memref<1x128xf32, #tpu.memory_space<vmem>>, vector<1x128xf32>
    %cst_26 = arith.constant dense<0.000000e+00> : vector<128xf32>
    %33 = vector.multi_reduction <add>, %10, %cst_26 [0] : vector<16x128xf32> to vector<128xf32>
    %34 = vector.shape_cast %33 : vector<128xf32> to vector<1x128xf32>
    %35 = arith.addf %32, %34 : vector<1x128xf32>
    %c0_27 = arith.constant 0 : index
    %c0_28 = arith.constant 0 : index
    %36 = vector.load %arg12[%c0_27, %c0_28] : memref<1x128xf32, #tpu.memory_space<vmem>>, vector<1x128xf32>
    tpu.vector_store %arg12[%c0_27, %c0_28], %35 {strides = array<i32>} : memref<1x128xf32, #tpu.memory_space<vmem>>, vector<1x128xf32>,
    %c2_i32 = arith.constant 2 : i32
    %37 = arith.cmpi eq, %arg1, %c2_i32 : i32
    %38 = arith.extui %37 : i1 to i32
    %c0_i32_29 = arith.constant 0 : i32
    %39 = arith.cmpi ne, %38, %c0_i32_29 : i32
    scf.if %39 {
      %c0_30 = arith.constant 0 : index
      %c0_31 = arith.constant 0 : index
      %40 = vector.load %arg4[%c0_30, %c0_31] : memref<1x128xf32, #tpu.memory_space<vmem>>, vector<1x128xf32>
      %c0_32 = arith.constant 0 : index
      %c0_33 = arith.constant 0 : index
      %41 = vector.load %arg5[%c0_32, %c0_33] : memref<1x128xf32, #tpu.memory_space<vmem>>, vector<1x128xf32>
      %c0_34 = arith.constant 0 : index
      %c0_35 = arith.constant 0 : index
      %42 = vector.load %arg6[%c0_34, %c0_35] : memref<1x128xf32, #tpu.memory_space<vmem>>, vector<1x128xf32>
      %c0_36 = arith.constant 0 : index
      %c0_37 = arith.constant 0 : index
      %43 = vector.load %arg8[%c0_36, %c0_37] : memref<1x128xf32, #tpu.memory_space<vmem>>, vector<1x128xf32>
      %c0_38 = arith.constant 0 : index
      %c0_39 = arith.constant 0 : index
      %44 = vector.load %arg9[%c0_38, %c0_39] : memref<1x128xf32, #tpu.memory_space<vmem>>, vector<1x128xf32>
      %c0_40 = arith.constant 0 : index
      %c0_41 = arith.constant 0 : index
      %45 = vector.load %arg10[%c0_40, %c0_41] : memref<1x128xf32, #tpu.memory_space<vmem>>, vector<1x128xf32>
      %c0_42 = arith.constant 0 : index
      %c0_43 = arith.constant 0 : index
      %46 = vector.load %arg11[%c0_42, %c0_43] : memref<1x128xf32, #tpu.memory_space<vmem>>, vector<1x128xf32>
      %47 = arith.subf %46, %44 : vector<1x128xf32>
      %c0_44 = arith.constant 0 : index
      %c0_45 = arith.constant 0 : index
      %48 = vector.load %arg12[%c0_44, %c0_45] : memref<1x128xf32, #tpu.memory_space<vmem>>, vector<1x128xf32>
      %49 = arith.subf %48, %45 : vector<1x128xf32>
      %cst_46 = arith.constant 4.800000e+01 : f32
      %50 = vector.broadcast %cst_46 : f32 to vector<1x128xf32>
      %51 = arith.subf %50, %43 : vector<1x128xf32>
      %cst_47 = arith.constant 0.020833334 : f32
      %52 = vector.broadcast %cst_47 : f32 to vector<1x128xf32>
      %53 = arith.mulf %43, %52 : vector<1x128xf32>
      %cst_48 = arith.constant 1.000000e+00 : f32
      %54 = vector.broadcast %cst_48 : f32 to vector<1x128xf32>
      %55 = arith.subf %54, %53 : vector<1x128xf32>
      %cst_49 = arith.constant 0.020833334 : f32
      %56 = vector.broadcast %cst_49 : f32 to vector<1x128xf32>
      %57 = arith.mulf %55, %56 : vector<1x128xf32>
      %cst_50 = arith.constant 2.000000e+00 : f32
      %58 = vector.broadcast %cst_50 : f32 to vector<1x128xf32>
      %59 = arith.mulf %58, %40 : vector<1x128xf32>
      %60 = arith.mulf %59, %44 : vector<1x128xf32>
      %61 = arith.subf %45, %60 : vector<1x128xf32>
      %62 = arith.mulf %40, %40 : vector<1x128xf32>
      %63 = arith.mulf %62, %43 : vector<1x128xf32>
      %64 = arith.addf %61, %63 : vector<1x128xf32>
      %65 = arith.mulf %57, %64 : vector<1x128xf32>
      %cst_51 = arith.constant 0.020833334 : f32
      %66 = vector.broadcast %cst_51 : f32 to vector<1x128xf32>
      %67 = arith.mulf %53, %66 : vector<1x128xf32>
      %cst_52 = arith.constant 2.000000e+00 : f32
      %68 = vector.broadcast %cst_52 : f32 to vector<1x128xf32>
      %69 = arith.mulf %68, %41 : vector<1x128xf32>
      %70 = arith.mulf %69, %47 : vector<1x128xf32>
      %71 = arith.subf %49, %70 : vector<1x128xf32>
      %72 = arith.mulf %41, %41 : vector<1x128xf32>
      %73 = arith.mulf %72, %51 : vector<1x128xf32>
      %74 = arith.addf %71, %73 : vector<1x128xf32>
      %75 = arith.mulf %67, %74 : vector<1x128xf32>
      %76 = arith.mulf %53, %55 : vector<1x128xf32>
      %77 = arith.mulf %53, %47 : vector<1x128xf32>
      %78 = arith.mulf %55, %44 : vector<1x128xf32>
      %79 = arith.subf %77, %78 : vector<1x128xf32>
      %cst_53 = arith.constant 0.020833334 : f32
      %80 = vector.broadcast %cst_53 : f32 to vector<1x128xf32>
      %81 = arith.mulf %80, %79 : vector<1x128xf32>
      %82 = arith.addf %76, %81 : vector<1x128xf32>
      %cst_54 = arith.constant 2.000000e+00 : f32
      %83 = vector.broadcast %cst_54 : f32 to vector<1x128xf32>
      %84 = arith.mulf %83, %42 : vector<1x128xf32>
      %85 = arith.mulf %84, %82 : vector<1x128xf32>
      %86 = arith.mulf %53, %55 : vector<1x128xf32>
      %87 = arith.mulf %86, %42 : vector<1x128xf32>
      %88 = arith.mulf %87, %42 : vector<1x128xf32>
      %89 = arith.addf %65, %75 : vector<1x128xf32>
      %90 = arith.addf %89, %85 : vector<1x128xf32>
      %91 = arith.subf %90, %88 : vector<1x128xf32>
      %c0_55 = arith.constant 0 : index
      %c0_56 = arith.constant 0 : index
      %92 = vector.load %arg7[%c0_55, %c0_56] : memref<1x128xf32, #tpu.memory_space<vmem>>, vector<1x128xf32>
      tpu.vector_store %arg7[%c0_55, %c0_56], %91 {strides = array<i32>} : memref<1x128xf32, #tpu.memory_space<vmem>>, vector<1x128xf32>,
    } else {
    }
    return
  }
  func.func @transform_0(%arg0: i32, %arg1: i32) -> (i32, i32) {
    %c0_i32 = arith.constant 0 : i32
    return %arg1, %arg0 : i32, i32
  }
  func.func @transform_1(%arg0: i32, %arg1: i32) -> (i32, i32) {
    %c0_i32 = arith.constant 0 : i32
    return %arg1, %arg0 : i32, i32
  }
  func.func @transform_2(%arg0: i32, %arg1: i32) -> (i32, i32) {
    %c0_i32 = arith.constant 0 : i32
    %c0_i32_0 = arith.constant 0 : i32
    return %c0_i32, %arg0 : i32, i32
  }
  func.func @transform_3(%arg0: i32, %arg1: i32) -> (i32, i32) {
    %c0_i32 = arith.constant 0 : i32
    %c0_i32_0 = arith.constant 0 : i32
    return %c0_i32, %arg0 : i32, i32
  }
  func.func @transform_4(%arg0: i32, %arg1: i32) -> (i32, i32) {
    %c0_i32 = arith.constant 0 : i32
    %c0_i32_0 = arith.constant 0 : i32
    return %c0_i32, %arg0 : i32, i32
  }
  func.func @transform_5(%arg0: i32, %arg1: i32) -> (i32, i32) {
    %c0_i32 = arith.constant 0 : i32
    %c0_i32_0 = arith.constant 0 : i32
    return %c0_i32, %arg0 : i32, i32
  }
}

</mosaic_0001>

<llo_original>
// kernel: tpu_custom_call.1
$region0: #{tpu_custom_call.1}
  #allocation0 [shape = 'u32[]', space=smem, size = 0x4, offset = 0x4, fixed_abs, tag = 'smem constant byte address 0x4 - core index']
  #allocation1 [shape = 'u32[144,128]{1,0:T(1,128)}', space=vmem, size = 0x12000, scoped, tag = 'internal scratch']
  #allocation2 [shape = 'f32[1,128]{1,0:T(1,128)}', space=vmem, size = 0x200, scoped, tag = 'scratch operand']
  #allocation3 [shape = 'f32[1,128]{1,0:T(1,128)}', space=vmem, size = 0x200, scoped, tag = 'scratch operand']
  #allocation4 [shape = 'f32[1,128]{1,0:T(1,128)}', space=vmem, size = 0x200, scoped, tag = 'scratch operand']
  #allocation5 [shape = 'f32[1,128]{1,0:T(1,128)}', space=vmem, size = 0x200, scoped, tag = 'scratch operand']
  #allocation6 [shape = 'f32[1,128]{1,0:T(1,128)}', space=vmem, size = 0x200, scoped, tag = 'scratch operand']
  %s0 = inlined_call_operand.hbm [shape: f32[48,128], index: 0, kind: input, shape index: {}]
  %s1 = inlined_call_operand.hbm [shape: f32[48,128], index: 1, kind: input, shape index: {}]
  %s2 = inlined_call_operand.vmem [shape: f32[1,128], index: 2, kind: input, shape index: {}]
  %s3 = inlined_call_operand.vmem [shape: f32[1,128], index: 3, kind: input, shape index: {}]
  %s4 = inlined_call_operand.vmem [shape: f32[1,128], index: 4, kind: input, shape index: {}]
  %s5 = inlined_call_operand.hbm [shape: f32[1,128], index: 5, kind: output, shape index: {}]
  %s6 = sld [smem:[#allocation0]]
  $region69: #{tpu_custom_call.1} parent=0
    _
  %s8 = ssub.s32 1, %s6
  %s9 = scalar_select 0, %s8, %s6
  $region1: #{tpu_custom_call.1} parent=0
    #allocation7 [shape = 'u8[16384]{0}', space=vmem, size = 0x4000, scoped, tag = 'input window, operand 0']
    #allocation8 [shape = 's32[2]{0}', space=sflag, size = 0x8, scoped, tag = 'scoped memory for tpu_custom_call.1']
    #allocation9 [shape = 's32[2]{0}', space=sflag, size = 0x8, scoped, tag = 'scoped memory for tpu_custom_call.1']
    #allocation10 [shape = 'u8[16384]{0}', space=vmem, size = 0x4000, scoped, tag = 'input window, operand 1']
    #allocation11 [shape = 's32[2]{0}', space=sflag, size = 0x8, scoped, tag = 'scoped memory for tpu_custom_call.1']
    #allocation12 [shape = 'u8[512]{0}', space=vmem, size = 0x400, scoped, tag = 'output window, operand 0, single buffered']
    %10 = vsyncpa [#allocation8], 0
    %s11 = scalar_lea.sflag [#allocation8], 1
    %12 = vsyncpa %s11, 0
    %13 = vsyncpa [#allocation11], 0
    %s14 = scalar_lea.sflag [#allocation11], 1
    %15 = vsyncpa %s14, 0
    %16 = vsyncpa [#allocation9], 0
    loop: start=0, step=1, limit=5
    $region2: #{tpu_custom_call.1} parent=1 // loop_pre_header
      _
    $region3: #{tpu_custom_call.1} parent=1 // loop_header
      %s18 = sphi 0, %s22
      %p19 = scmp.ge.s32.totalorder %s18, 5
      %s25 = sphi 0, %s37
      %s26 = sphi 0, %s33
      %s27 = sphi 0, %s25
      %s28 = sphi 0, %s26
      %s29 = sphi 0, %s27
      %s30 = sphi 0, %s28
      %s42 = sphi 0, %s44
      %s45 = sphi 0, %s42
      %s46 = sphi 0, %s45
      %s62 = sphi 0, %s46
      %s70 = sphi 0, %s72
      %s73 = sphi 0, %s70
      %s74 = sphi 0, %s73
      %s90 = sphi 0, %s74
      %s96 = sphi 0, %s98
      %s99 = sphi 0, %s96
      %s100 = sphi 0, %s99
      %s116 = sphi 0, %s100
      %s122 = sphi 0, %s124
      %s125 = sphi 0, %s122
      %s126 = sphi 0, %s125
      %s142 = sphi 0, %s126
      %s148 = sphi 0, %s150
      %s151 = sphi 0, %s148
      %s152 = sphi 0, %s151
      %s168 = sphi 0, %s152
      %s174 = sphi 0, %s176
      %s177 = sphi 0, %s174
      %s178 = sphi 0, %s177
      %s194 = sphi 0, %s178
    $region4: #{tpu_custom_call.1} parent=1 // loop_header_branch
      %21 = sbr.rel (%p19) target = $region8
    $region5: #{tpu_custom_call.1} parent=1 // loop_body
      %s23 = ssub.s32 %s18, 1
      %s24 = ssub.s32 %s18, 2
      %s31 = sadd.s32 1, %s26
      %p32 = scmp.ge.s32.totalorder %s31, 3
      %s33 = scalar_select %p32, 0, %s31
      %s34 = sadd.s32 1, %s25
      %s35 = scalar_select %p32, %s34, %s25
      %p36 = scmp.ge.s32.totalorder %s35, 1
      %s37 = scalar_select %p36, 0, %s35
      %s38 = ssub.s32 %s26, %s33
      %s39 = ssub.s32 %s25, %s37
      %s40 = sor.u32 %s38, %s39
      %p41 = scmp.eq.s32.totalorder %s40, 0
      %s43 = sadd.s32 %s42, 1
      %s44 = scalar_select %p41, %s42, %s43
      %p47 = pneg %p41
      %p48 = scmp.eq.s32.totalorder %s18, 2
      %p49 = por %p47, %p48
      %p50 = scmp.ne.s32.totalorder %s42, %s45
      %p51 = scmp.eq.s32.totalorder %s18, 0
      %p52 = por %p50, %p51
      %p53 = scmp.ne.s32.totalorder %s42, %s45
      %p54 = scmp.eq.s32.totalorder %s23, 2
      %p55 = por %p53, %p54
      %p56 = scmp.ne.s32.totalorder %s45, %s46
      %p57 = scmp.eq.s32.totalorder %s23, 0
      %p58 = por %p56, %p57
      %p59 = scmp.ne.s32.totalorder %s45, %s46
      %p60 = scmp.eq.s32.totalorder %s24, 2
      %p61 = por %p59, %p60
      %p63 = scmp.ne.s32.totalorder %s46, %s62
      %p64 = scmp.eq.s32.totalorder %s24, 0
      %p65 = por %p63, %p64
      %s66 = ssub.s32 %s26, %s33
      %s67 = ssub.s32 %s25, %s37
      %s68 = sor.u32 %s66, %s67
      %p69 = scmp.eq.s32.totalorder %s68, 0
      %s71 = sadd.s32 %s70, 1
      %s72 = scalar_select %p69, %s70, %s71
      %p75 = pneg %p69
      %p76 = scmp.eq.s32.totalorder %s18, 2
      %p77 = por %p75, %p76
      %p78 = scmp.ne.s32.totalorder %s70, %s73
      %p79 = scmp.eq.s32.totalorder %s18, 0
      %p80 = por %p78, %p79
      %p81 = scmp.ne.s32.totalorder %s70, %s73
      %p82 = scmp.eq.s32.totalorder %s23, 2
      %p83 = por %p81, %p82
      %p84 = scmp.ne.s32.totalorder %s73, %s74
      %p85 = scmp.eq.s32.totalorder %s23, 0
      %p86 = por %p84, %p85
      %p87 = scmp.ne.s32.totalorder %s73, %s74
      %p88 = scmp.eq.s32.totalorder %s24, 2
      %p89 = por %p87, %p88
      %p91 = scmp.ne.s32.totalorder %s74, %s90
      %p92 = scmp.eq.s32.totalorder %s24, 0
      %p93 = por %p91, %p92
      %s94 = ssub.s32 %s25, %s37
      %p95 = scmp.eq.s32.totalorder %s94, 0
      %s97 = sadd.s32 %s96, 1
      %s98 = scalar_select %p95, %s96, %s97
      %p101 = pneg %p95
      %p102 = scmp.eq.s32.totalorder %s18, 2
      %p103 = por %p101, %p102
      %p104 = scmp.ne.s32.totalorder %s96, %s99
      %p105 = scmp.eq.s32.totalorder %s18, 0
      %p106 = por %p104, %p105
      %p107 = scmp.ne.s32.totalorder %s96, %s99
      %p108 = scmp.eq.s32.totalorder %s23, 2
      %p109 = por %p107, %p108
      %p110 = scmp.ne.s32.totalorder %s99, %s100
      %p111 = scmp.eq.s32.totalorder %s23, 0
      %p112 = por %p110, %p111
      %p113 = scmp.ne.s32.totalorder %s99, %s100
      %p114 = scmp.eq.s32.totalorder %s24, 2
      %p115 = por %p113, %p114
      %p117 = scmp.ne.s32.totalorder %s100, %s116
      %p118 = scmp.eq.s32.totalorder %s24, 0
      %p119 = por %p117, %p118
      %s120 = ssub.s32 %s25, %s37
      %p121 = scmp.eq.s32.totalorder %s120, 0
      %s123 = sadd.s32 %s122, 1
      %s124 = scalar_select %p121, %s122, %s123
      %p127 = pneg %p121
      %p128 = scmp.eq.s32.totalorder %s18, 2
      %p129 = por %p127, %p128
      %p130 = scmp.ne.s32.totalorder %s122, %s125
      %p131 = scmp.eq.s32.totalorder %s18, 0
      %p132 = por %p130, %p131
      %p133 = scmp.ne.s32.totalorder %s122, %s125
      %p134 = scmp.eq.s32.totalorder %s23, 2
      %p135 = por %p133, %p134
      %p136 = scmp.ne.s32.totalorder %s125, %s126
      %p137 = scmp.eq.s32.totalorder %s23, 0
      %p138 = por %p136, %p137
      %p139 = scmp.ne.s32.totalorder %s125, %s126
      %p140 = scmp.eq.s32.totalorder %s24, 2
      %p141 = por %p139, %p140
      %p143 = scmp.ne.s32.totalorder %s126, %s142
      %p144 = scmp.eq.s32.totalorder %s24, 0
      %p145 = por %p143, %p144
      %s146 = ssub.s32 %s25, %s37
      %p147 = scmp.eq.s32.totalorder %s146, 0
      %s149 = sadd.s32 %s148, 1
      %s150 = scalar_select %p147, %s148, %s149
      %p153 = pneg %p147
      %p154 = scmp.eq.s32.totalorder %s18, 2
      %p155 = por %p153, %p154
      %p156 = scmp.ne.s32.totalorder %s148, %s151
      %p157 = scmp.eq.s32.totalorder %s18, 0
      %p158 = por %p156, %p157
      %p159 = scmp.ne.s32.totalorder %s148, %s151
      %p160 = scmp.eq.s32.totalorder %s23, 2
      %p161 = por %p159, %p160
      %p162 = scmp.ne.s32.totalorder %s151, %s152
      %p163 = scmp.eq.s32.totalorder %s23, 0
      %p164 = por %p162, %p163
      %p165 = scmp.ne.s32.totalorder %s151, %s152
      %p166 = scmp.eq.s32.totalorder %s24, 2
      %p167 = por %p165, %p166
      %p169 = scmp.ne.s32.totalorder %s152, %s168
      %p170 = scmp.eq.s32.totalorder %s24, 0
      %p171 = por %p169, %p170
      %s172 = ssub.s32 %s25, %s37
      %p173 = scmp.eq.s32.totalorder %s172, 0
      %s175 = sadd.s32 %s174, 1
      %s176 = scalar_select %p173, %s174, %s175
      %p179 = pneg %p173
      %p180 = scmp.eq.s32.totalorder %s18, 2
      %p181 = por %p179, %p180
      %p182 = scmp.ne.s32.totalorder %s174, %s177
      %p183 = scmp.eq.s32.totalorder %s18, 0
      %p184 = por %p182, %p183
      %p185 = scmp.ne.s32.totalorder %s174, %s177
      %p186 = scmp.eq.s32.totalorder %s23, 2
      %p187 = por %p185, %p186
      %p188 = scmp.ne.s32.totalorder %s177, %s178
      %p189 = scmp.eq.s32.totalorder %s23, 0
      %p190 = por %p188, %p189
      %p191 = scmp.ne.s32.totalorder %s177, %s178
      %p192 = scmp.eq.s32.totalorder %s24, 2
      %p193 = por %p191, %p192
      %p195 = scmp.ne.s32.totalorder %s178, %s194
      %p196 = scmp.eq.s32.totalorder %s24, 0
      %p197 = por %p195, %p196
      %p198 = scmp.le.s32.totalorder 1, %s18
      %p199 = scmp.lt.s32.totalorder %s18, 4
      %p200 = pnand %p198, %p199
      %p201 = pneg %p200
      // Predicated region
      $region9: #{tpu_custom_call.1} parent=5 // pred_check
        _
      $region10: #{tpu_custom_call.1} parent=5 // pred_check_branch
        %203 = sbr.rel (%p200) target = $region12
      $region11: #{tpu_custom_call.1} parent=5 // pred_region
        %s204 = ssub.s32 %s18, 1
        // Predicated region
        $region13: #{tpu_custom_call.1} parent=11 // pred_check
          %p205 = pneg %p112
        $region14: #{tpu_custom_call.1} parent=11 // pred_check_branch
          %207 = sbr.rel (%p205) target = $region16
        $region15: #{tpu_custom_call.1} parent=11 // pred_region
          %p208 = scmp.lt.s32.totalorder %s27, 0
          %s209 = scalar_select %p208, %s27, 0
          %s210 = scalar_lea.vmem %s2, %s209
        $region16: #{tpu_custom_call.1} parent=11 // pred_fallthru
          _
        // Predicated region
        $region17: #{tpu_custom_call.1} parent=11 // pred_check
          %p211 = pneg %p138
        $region18: #{tpu_custom_call.1} parent=11 // pred_check_branch
          %213 = sbr.rel (%p211) target = $region20
        $region19: #{tpu_custom_call.1} parent=11 // pred_region
          %p214 = scmp.lt.s32.totalorder %s27, 0
          %s215 = scalar_select %p214, %s27, 0
          %s216 = scalar_lea.vmem %s3, %s215
        $region20: #{tpu_custom_call.1} parent=11 // pred_fallthru
          _
        // Predicated region
        $region21: #{tpu_custom_call.1} parent=11 // pred_check
          %p217 = pneg %p164
        $region22: #{tpu_custom_call.1} parent=11 // pred_check_branch
          %219 = sbr.rel (%p217) target = $region24
        $region23: #{tpu_custom_call.1} parent=11 // pred_region
          %p220 = scmp.lt.s32.totalorder %s27, 0
          %s221 = scalar_select %p220, %s27, 0
          %s222 = scalar_lea.vmem %s4, %s221
        $region24: #{tpu_custom_call.1} parent=11 // pred_fallthru
          _
      $region12: #{tpu_custom_call.1} parent=5 // pred_fallthru
        _
      %p223 = scmp.lt.s32.totalorder %s18, 3
      // Predicated region
      $region25: #{tpu_custom_call.1} parent=5 // pred_check
        %p224 = pneg %p223
      $region26: #{tpu_custom_call.1} parent=5 // pred_check_branch
        %226 = sbr.rel (%p224) target = $region28
      $region27: #{tpu_custom_call.1} parent=5 // pred_region
        // Predicated region
        $region29: #{tpu_custom_call.1} parent=27 // pred_check
          %p227 = pneg %p52
        $region30: #{tpu_custom_call.1} parent=27 // pred_check_branch
          %229 = sbr.rel (%p227) target = $region32
        $region31: #{tpu_custom_call.1} parent=27 // pred_region
          %s230 = sand.u32 %s42, 1
          %s231 = scalar_lea.sflag [#allocation8], %s230
          %s232 = sand.u32 %s42, 1
          %s233 = smul.addr %s232, 16
          %s234 = scalar_lea.vmem [#allocation7], %s233
          %s235 = smul.u32 2, %s26
          %s237 = ssub.s32 256, 256
          %238 = vsyncadd %s231, %s237
          %s239 = sadd.s32 %s25, %s235
          %s240 = smul.addr %s239, 128
          %s241 = scalar_lea.hbm %s0, %s240
          %s242 = sshll.u32 %s234, 4
          %s243 = int_to_ptr.vmem [resolvable:$true] %s242
          %248 = dma.hbm_to_vmem [thread:$0]  %s241, 256, %s243, %s231, 128, 128, 8
        $region32: #{tpu_custom_call.1} parent=27 // pred_fallthru
          _
        // Predicated region
        $region33: #{tpu_custom_call.1} parent=27 // pred_check
          %p249 = pneg %p80
        $region34: #{tpu_custom_call.1} parent=27 // pred_check_branch
          %251 = sbr.rel (%p249) target = $region36
        $region35: #{tpu_custom_call.1} parent=27 // pred_region
          %s252 = sand.u32 %s70, 1
          %s253 = scalar_lea.sflag [#allocation11], %s252
          %s254 = sand.u32 %s70, 1
          %s255 = smul.addr %s254, 16
          %s256 = scalar_lea.vmem [#allocation10], %s255
          %s257 = smul.u32 2, %s26
          %s259 = ssub.s32 256, 256
          %260 = vsyncadd %s253, %s259
          %s261 = sadd.s32 %s25, %s257
          %s262 = smul.addr %s261, 128
          %s263 = scalar_lea.hbm %s1, %s262
          %s264 = sshll.u32 %s256, 4
          %s265 = int_to_ptr.vmem [resolvable:$true] %s264
          %270 = dma.hbm_to_vmem [thread:$0]  %s263, 256, %s265, %s253, 128, 128, 8
        $region36: #{tpu_custom_call.1} parent=27 // pred_fallthru
          _
      $region28: #{tpu_custom_call.1} parent=5 // pred_fallthru
        _
      %p271 = scmp.le.s32.totalorder 1, %s18
      %p272 = scmp.lt.s32.totalorder %s18, 4
      %p273 = pnand %p271, %p272
      %p274 = pneg %p273
      // Predicated region
      $region37: #{tpu_custom_call.1} parent=5 // pred_check
        _
      $region38: #{tpu_custom_call.1} parent=5 // pred_check_branch
        %276 = sbr.rel (%p273) target = $region40
      $region39: #{tpu_custom_call.1} parent=5 // pred_region
        %s277 = ssub.s32 %s18, 1
        %s278 = sand.u32 %s45, 1
        %s279 = scalar_lea.sflag [#allocation8], %s278
        %s280 = sand.u32 %s45, 1
        %s281 = smul.addr %s280, 16
        %s282 = scalar_lea.vmem [#allocation7], %s281
        // Predicated region
        $region41: #{tpu_custom_call.1} parent=39 // pred_check
          %p283 = pneg %p58
        $region42: #{tpu_custom_call.1} parent=39 // pred_check_branch
          %285 = sbr.rel (%p283) target = $region44
        $region43: #{tpu_custom_call.1} parent=39 // pred_region
          %286 = dma.done %s279, 256
        $region44: #{tpu_custom_call.1} parent=39 // pred_fallthru
          _
        %s287 = sand.u32 %s73, 1
        %s288 = scalar_lea.sflag [#allocation11], %s287
        %s289 = sand.u32 %s73, 1
        %s290 = smul.addr %s289, 16
        %s291 = scalar_lea.vmem [#allocation10], %s290
        // Predicated region
        $region45: #{tpu_custom_call.1} parent=39 // pred_check
          %p292 = pneg %p86
        $region46: #{tpu_custom_call.1} parent=39 // pred_check_branch
          %294 = sbr.rel (%p292) target = $region48
        $region47: #{tpu_custom_call.1} parent=39 // pred_region
          %295 = dma.done %s288, 256
        $region48: #{tpu_custom_call.1} parent=39 // pred_fallthru
          _
        %s296 = sand.u32 %s45, 1
        %s297 = scalar_lea.sflag [#allocation8], %s296
        %s298 = sand.u32 %s45, 1
        %s299 = smul.addr %s298, 16
        %s300 = scalar_lea.vmem [#allocation7], %s299
        %p301 = pneg %p58
        %p302 = pneg %p55
        %s303 = sand.u32 %s73, 1
        %s304 = scalar_lea.sflag [#allocation11], %s303
        %s305 = sand.u32 %s73, 1
        %s306 = smul.addr %s305, 16
        %s307 = scalar_lea.vmem [#allocation10], %s306
        %p308 = pneg %p86
        %p309 = pneg %p83
        %p310 = scmp.lt.s32.totalorder %s27, 0
        %s311 = scalar_select %p310, %s27, 0
        %s312 = scalar_lea.vmem %s2, %s311
        %p313 = pneg %p112
        %p314 = pneg %p109
        %p315 = scmp.lt.s32.totalorder %s27, 0
        %s316 = scalar_select %p315, %s27, 0
        %s317 = scalar_lea.vmem %s3, %s316
        %p318 = pneg %p138
        %p319 = pneg %p135
        %p320 = scmp.lt.s32.totalorder %s27, 0
        %s321 = scalar_select %p320, %s27, 0
        %s322 = scalar_lea.vmem %s4, %s321
        %p323 = pneg %p164
        %p324 = pneg %p161
        %p325 = pneg %p190
        %p326 = pneg %p187
        %s327 = smul.u32 2, %s28
        %s328 = smul.u32 2, %s28
        %p329 = scmp.lt.s32.totalorder %s27, 0
        %s330 = scalar_select %p329, %s27, 0
        %s331 = scalar_lea.vmem %s2, %s330
        %p332 = scmp.lt.s32.totalorder %s27, 0
        %s333 = scalar_select %p332, %s27, 0
        %s334 = scalar_lea.vmem %s3, %s333
        %p335 = scmp.lt.s32.totalorder %s27, 0
        %s336 = scalar_select %p335, %s27, 0
        %s337 = scalar_lea.vmem %s4, %s336
        %p338 = scmp.eq.s32.totalorder %s28, 0
        // Predicated region
        $region49: #{tpu_custom_call.1} parent=39 // pred_check
          %p339 = pneg %p338
        $region50: #{tpu_custom_call.1} parent=39 // pred_check_branch
          %341 = sbr.rel (%p339) target = $region52
        $region51: #{tpu_custom_call.1} parent=39 // pred_region
          %342 = vst [vmem:[#allocation2] sm:$0x1] 0.0
          %343 = vst [vmem:[#allocation3] sm:$0x1] 0.0
          %344 = vst [vmem:[#allocation4] sm:$0x1] 0.0
          %345 = vst [vmem:[#allocation5] sm:$0x1] 0.0
          %346 = vst [vmem:[#allocation6] sm:$0x1] 0.0
        $region52: #{tpu_custom_call.1} parent=39 // pred_fallthru
          _
        %v347 = vld [vmem:[%s282] sm:$0xff]
        %v348 = vld [vmem:[%s282 + $0x8] sm:$0xff]
        %v349 = vld [vmem:[%s291] sm:$0xff]
        %v350 = vld [vmem:[%s291 + $0x8] sm:$0xff]
        %vm351 = vcmp.eq.f32.partialorder %v349, 1.0
        %vm352 = vcmp.eq.f32.partialorder %v350, 1.0
        %v353 = vsel %vm351, 1, 0
        %v354 = vsel %vm352, 1, 0
        %v355 = vcvt.s32.f32 %v353
        %v356 = vcvt.s32.f32 %v354
        %v357 = vmul.f32 %v347, %v355
        %v358 = vmul.f32 %v348, %v356
        %v359 = vmul.f32 %v347, %v347
        %v360 = vmul.f32 %v348, %v348
        %v361 = vld [vmem:[#allocation2] sm:$0x1]
        %v362 = vadd.f32 %v355, %v356
        %v363 = vrot.slane %v362, 4
        %v364 = vadd.f32 %v362, %v363
        %v365 = vrot.slane %v364, 2
        %v366 = vadd.f32 %v364, %v365
        %v367 = vrot.slane %v366, 1
        %v368 = vadd.f32 %v366, %v367
        %v369 = vadd.f32 %v361, %v368
        %370 = vst [vmem:[#allocation2] sm:$0x1] %v369
        %v371 = vld [vmem:[#allocation3] sm:$0x1]
        %v372 = vadd.f32 %v357, %v358
        %v373 = vrot.slane %v372, 4
        %v374 = vadd.f32 %v372, %v373
        %v375 = vrot.slane %v374, 2
        %v376 = vadd.f32 %v374, %v375
        %v377 = vrot.slane %v376, 1
        %v378 = vadd.f32 %v376, %v377
        %v379 = vadd.f32 %v371, %v378
        %380 = vst [vmem:[#allocation3] sm:$0x1] %v379
        %v381 = vld [vmem:[#allocation4] sm:$0x1]
        %v382 = vmul.f32 %v359, %v355
        %v383 = vmul.f32 %v360, %v356
        %v384 = vadd.f32 %v382, %v383
        %v385 = vrot.slane %v384, 4
        %v386 = vadd.f32 %v384, %v385
        %v387 = vrot.slane %v386, 2
        %v388 = vadd.f32 %v386, %v387
        %v389 = vrot.slane %v388, 1
        %v390 = vadd.f32 %v388, %v389
        %v391 = vadd.f32 %v381, %v390
        %392 = vst [vmem:[#allocation4] sm:$0x1] %v391
        %v393 = vld [vmem:[#allocation5] sm:$0x1]
        %v394 = vadd.f32 %v347, %v348
        %v395 = vrot.slane %v394, 4
        %v396 = vadd.f32 %v394, %v395
        %v397 = vrot.slane %v396, 2
        %v398 = vadd.f32 %v396, %v397
        %v399 = vrot.slane %v398, 1
        %v400 = vadd.f32 %v398, %v399
        %v401 = vadd.f32 %v393, %v400
        %402 = vst [vmem:[#allocation5] sm:$0x1] %v401
        %v403 = vld [vmem:[#allocation6] sm:$0x1]
        %v404 = vadd.f32 %v359, %v360
        %v405 = vrot.slane %v404, 4
        %v406 = vadd.f32 %v404, %v405
        %v407 = vrot.slane %v406, 2
        %v408 = vadd.f32 %v406, %v407
        %v409 = vrot.slane %v408, 1
        %v410 = vadd.f32 %v408, %v409
        %v411 = vadd.f32 %v403, %v410
        %412 = vst [vmem:[#allocation6] sm:$0x1] %v411
        %p413 = scmp.eq.s32.totalorder %s28, 2
        // Predicated region
        $region53: #{tpu_custom_call.1} parent=39 // pred_check
          %p414 = pneg %p413
        $region54: #{tpu_custom_call.1} parent=39 // pred_check_branch
          %416 = sbr.rel (%p414) target = $region56
        $region55: #{tpu_custom_call.1} parent=39 // pred_region
          %v417 = vld [vmem:[%s331] sm:$0x1]
          %v418 = vld [vmem:[%s334] sm:$0x1]
          %v419 = vld [vmem:[%s337] sm:$0x1]
          %v420 = vld [vmem:[#allocation2] sm:$0x1]
          %v421 = vld [vmem:[#allocation3] sm:$0x1]
          %v422 = vld [vmem:[#allocation4] sm:$0x1]
          %v423 = vld [vmem:[#allocation5] sm:$0x1]
          %v424 = vsub.f32 %v423, %v421
          %v425 = vld [vmem:[#allocation6] sm:$0x1]
          %v426 = vsub.f32 %v425, %v422
          %v427 = vsub.f32 48.0, %v420
          %v428 = vmul.f32 %v420, 0.020833334
          %v429 = vsub.f32 1.0, %v428
          %v430 = vmul.f32 %v429, 0.020833334
          %v431 = vmul.f32 %v417, 2.0
          %v432 = vmul.f32 %v431, %v421
          %v433 = vsub.f32 %v422, %v432
          %v434 = vmul.f32 %v417, %v417
          %v435 = vmul.f32 %v434, %v420
          %v436 = vadd.f32 %v433, %v435
          %v437 = vmul.f32 %v430, %v436
          %v438 = vmul.f32 %v428, 0.020833334
          %v439 = vmul.f32 %v418, 2.0
          %v440 = vmul.f32 %v439, %v424
          %v441 = vsub.f32 %v426, %v440
          %v442 = vmul.f32 %v418, %v418
          %v443 = vmul.f32 %v442, %v427
          %v444 = vadd.f32 %v441, %v443
          %v445 = vmul.f32 %v438, %v444
          %v446 = vmul.f32 %v428, %v429
          %v447 = vmul.f32 %v428, %v424
          %v448 = vmul.f32 %v429, %v421
          %v449 = vsub.f32 %v447, %v448
          %v450 = vmul.f32 %v449, 0.020833334
          %v451 = vadd.f32 %v446, %v450
          %v452 = vmul.f32 %v419, 2.0
          %v453 = vmul.f32 %v452, %v451
          %v454 = vmul.f32 %v446, %v419
          %v455 = vmul.f32 %v454, %v419
          %v456 = vadd.f32 %v437, %v445
          %v457 = vadd.f32 %v456, %v453
          %v458 = vsub.f32 %v457, %v455
          %459 = vst [vmem:[#allocation12] sm:$0x1] %v458
        $region56: #{tpu_custom_call.1} parent=39 // pred_fallthru
          _
        // Predicated region
        $region57: #{tpu_custom_call.1} parent=39 // pred_check
          %p460 = pneg %p187
        $region58: #{tpu_custom_call.1} parent=39 // pred_check_branch
          %462 = sbr.rel (%p460) target = $region60
        $region59: #{tpu_custom_call.1} parent=39 // pred_region
          %s464 = ssub.s32 16, 16
          %465 = vsyncadd [#allocation9], %s464
          %s466 = smul.addr %s27, 16
          %s467 = scalar_lea.hbm %s5, %s466
          %s469 = sshll.u32 [#allocation12], 4
          %s470 = int_to_ptr.vmem [resolvable:$true] %s469
          %472 = dma.vmem_to_hbm [thread:$0]  %s470, 16, %s467, [#allocation9]
        $region60: #{tpu_custom_call.1} parent=39 // pred_fallthru
          _
        // Predicated region
        $region61: #{tpu_custom_call.1} parent=39 // pred_check
          %p473 = pneg %p187
        $region62: #{tpu_custom_call.1} parent=39 // pred_check_branch
          %475 = sbr.rel (%p473) target = $region64
        $region63: #{tpu_custom_call.1} parent=39 // pred_region
          %476 = dma.done [#allocation9], 16
        $region64: #{tpu_custom_call.1} parent=39 // pred_fallthru
          _
      $region40: #{tpu_custom_call.1} parent=5 // pred_fallthru
        _
      %p477 = scmp.le.s32.totalorder 2, %s18
      // Predicated region
      $region65: #{tpu_custom_call.1} parent=5 // pred_check
        %p478 = pneg %p477
      $region66: #{tpu_custom_call.1} parent=5 // pred_check_branch
        %480 = sbr.rel (%p478) target = $region68
      $region67: #{tpu_custom_call.1} parent=5 // pred_region
        %s481 = ssub.s32 %s18, 2
      $region68: #{tpu_custom_call.1} parent=5 // pred_fallthru
        _
    $region6: #{tpu_custom_call.1} parent=1 // loop_footer
      %s22 = sadd.s32 1, %s18
    $region7: #{tpu_custom_call.1} parent=1 // loop_footer_branch
      %17 = sbr.rel target = $region3
    $region8: #{tpu_custom_call.1} parent=1 // loop_exit
      _
    %482 = vsyncpa [#allocation8], 1
    %s483 = scalar_lea.sflag [#allocation8], 1
    %484 = vsyncpa %s483, 1
    %485 = vsyncpa [#allocation11], 1
    %s486 = scalar_lea.sflag [#allocation11], 1
    %487 = vsyncpa %s486, 1
    %488 = vsyncpa [#allocation9], 1
    %s489 = scalar_lea.sflag [#allocation9], 1
    %490 = vsyncpa %s489, 1

</llo_original>
